<compile_context>
chip_gen: v7x
topology: tpu7x:2x2x1
jax: 0.10.0
libtpu: 0.0.40
codegen_flags: <defaults>
</compile_context>

<pallas_src>
import jax
import jax.numpy as jnp
from jax.experimental import pallas as pl
from jax.experimental.pallas import tpu as pltpu


# ---------------------------------------------------------------------------
# Kernel
# ---------------------------------------------------------------------------
def dqn_kernel(x_ref, w1_ref, b1_ref, w2_ref, b2_ref, o_ref):
    # fc1: X @ W1 + b1 (f32 accumulation on the MXU), ReLU in f32 on the VPU.
    h = jnp.dot(x_ref[...], w1_ref[...], preferred_element_type=jnp.float32)
    h = jnp.maximum(h + b1_ref[...], 0.0)          # (1, hid_p) broadcasts
    # fc2: H @ W2 + b2 (activations cast to weight dtype only to feed the MXU).
    out = jnp.dot(h.astype(w2_ref.dtype), w2_ref[...],
                  preferred_element_type=jnp.float32)
    o_ref[...] = (out + b2_ref[...]).astype(o_ref.dtype)


# ---------------------------------------------------------------------------
# Helpers
# ---------------------------------------------------------------------------
def _round_up(n, m):
    return ((n + m - 1) // m) * m


def _pad_to(a, shape):
    pads = [(0, t - s) for s, t in zip(a.shape, shape)]
    if all(p == (0, 0) for p in pads):
        return a
    return jnp.pad(a, pads)


def _tpu_vmem_capacity_bytes():
    try:
        return int(pltpu.get_tpu_info().vmem_capacity_bytes)
    except Exception:
        return 64 * 1024 * 1024  # conservative fallback (v7x per-core VMEM)


def _choose_block_b(b_pad, in_f, hid_p, out_f, w_itemsize, out_itemsize, sub,
                    budget_bytes):
    """Pick the largest batch tile that fits the VMEM budget (cap 2048 rows)."""
    # Weights/biases are double-buffered by the pipeline even with a constant
    # index_map, so count them twice.
    weight_bytes = 2 * ((in_f * hid_p + hid_p * out_f) * w_itemsize
                        + (hid_p + out_f) * 4)
    per_row = (2 * in_f * w_itemsize          # double-buffered X tile
               + hid_p * 4 + out_f * 4        # f32 hidden + f32 accumulator
               + 2 * out_f * out_itemsize)    # double-buffered output tile
    avail = max(budget_bytes - weight_bytes, sub * per_row)
    tb = min(2048, avail // per_row)
    tb = max(sub, (tb // sub) * sub)
    return int(min(tb, b_pad))


# ---------------------------------------------------------------------------
# One-time weight preparation (hoisted out of the per-call path)
# ---------------------------------------------------------------------------
def prepare_params(w1, b1, w2, b2, *, use_bf16=False):
    """Pad the hidden dim to a 128/256 lane multiple and (optionally) cast the
    weights to bf16.  Call ONCE at init and reuse the result across calls."""
    in_f, hidden = w1.shape
    out_f = w2.shape[1]
    align = 256 if hidden >= 256 else 128     # 256 feeds full v6e/v7x MXU tiles
    hid_p = _round_up(hidden, align)
    w_dtype = jnp.bfloat16 if use_bf16 else w1.dtype
    w1_p = _pad_to(w1, (in_f, hid_p)).astype(w_dtype)
    b1_p = _pad_to(jnp.reshape(b1, (1, hidden)), (1, hid_p)).astype(jnp.float32)
    w2_p = _pad_to(w2, (hid_p, out_f)).astype(w_dtype)
    b2_p = jnp.reshape(b2, (1, out_f)).astype(jnp.float32)
    return w1_p, b1_p, w2_p, b2_p


# ---------------------------------------------------------------------------
# Forward wrapper
# ---------------------------------------------------------------------------
def dqn_forward(x, params, *, block_b=None, out_dtype=jnp.float32):
    """x: (B, in_f); params: output of prepare_params (reused across calls)."""
    w1_p, b1_p, w2_p, b2_p = params
    in_f, hid_p = w1_p.shape
    out_f = w2_p.shape[1]
    assert x.shape[1] == in_f

    w_dtype = w1_p.dtype
    if x.dtype != w_dtype:
        # Callers on a hot path should pre-cast X to the weight dtype.
        x = x.astype(w_dtype)

    B = x.shape[0]
    w_itemsize = jnp.dtype(w_dtype).itemsize
    out_itemsize = jnp.dtype(out_dtype).itemsize
    sub = 16 if w_itemsize == 2 else 8        # sublane packing multiple
    b_pad = _round_up(B, sub)

    if block_b is None:
        budget = int(0.4 * _tpu_vmem_capacity_bytes())
        tb = _choose_block_b(b_pad, in_f, hid_p, out_f,
                             w_itemsize, out_itemsize, sub, budget)
        # Keep >= 2 grid steps when there is enough batch so the "parallel"
        # axis can shard across v7x's two TensorCores (free on v5e/v6e).
        if b_pad >= 2 * sub:
            tb = min(tb, max(sub, (b_pad // 2 // sub) * sub))
    else:
        tb = max(sub, (int(block_b) // sub) * sub)
    tb = int(min(tb, b_pad))

    b_p = _round_up(B, tb)
    x_p = _pad_to(x, (b_p, in_f)) if b_p != B else x   # pad last tile only

    # Rough VMEM need: double-buffered streamed tiles + (double-buffered)
    # resident weights + f32 temporaries, with 2x headroom; clamped to stay
    # comfortably inside each generation's physical VMEM.
    weight_bytes = 2 * ((in_f * hid_p + hid_p * out_f) * w_itemsize
                        + (hid_p + out_f) * 4)
    est = (2 * tb * in_f * w_itemsize + 2 * tb * out_f * out_itemsize
           + weight_bytes + tb * (hid_p + out_f) * 4)
    cap = _tpu_vmem_capacity_bytes()
    vmem_limit = int(min(max(2 * est, 16 * 1024 * 1024),
                         min(48 * 1024 * 1024, int(0.7 * cap))))

    grid = (b_p // tb,)

    out = pl.pallas_call(
        dqn_kernel,
        out_shape=jax.ShapeDtypeStruct((b_p, out_f), out_dtype),
        grid=grid,
        in_specs=[
            pl.BlockSpec((tb, in_f), lambda i: (i, 0)),       # streamed X tiles
            pl.BlockSpec((in_f, hid_p), lambda i: (0, 0)),    # resident W1
            pl.BlockSpec((1, hid_p), lambda i: (0, 0)),       # resident b1
            pl.BlockSpec((hid_p, out_f), lambda i: (0, 0)),   # resident W2
            pl.BlockSpec((1, out_f), lambda i: (0, 0)),       # resident b2
        ],
        out_specs=pl.BlockSpec((tb, out_f), lambda i: (i, 0)),
        compiler_params=pltpu.CompilerParams(
            dimension_semantics=("parallel",),
            vmem_limit_bytes=vmem_limit,
        ),
    )(x_p, w1_p, b1_p, w2_p, b2_p)

    return out if b_p == B else out[:B]


# ---------------------------------------------------------------------------
# Params (PyTorch nn.Linear-style init, weights stored pre-transposed)
# ---------------------------------------------------------------------------
def init_params(key, input_size, hidden_size, output_size, dtype=jnp.float32):
    k1, k2, k3, k4 = jax.random.split(key, 4)
    bound1 = 1.0 / jnp.sqrt(input_size)
    bound2 = 1.0 / jnp.sqrt(hidden_size)
    w1 = jax.random.uniform(k1, (input_size, hidden_size), dtype, -bound1, bound1)
    b1 = jax.random.uniform(k2, (1, hidden_size), dtype, -bound1, bound1)
    w2 = jax.random.uniform(k3, (hidden_size, output_size), dtype, -bound2, bound2)
    b2 = jax.random.uniform(k4, (1, output_size), dtype, -bound2, bound2)
    return w1, b1, w2, b2


if __name__ == "__main__":
    key = jax.random.PRNGKey(0)
    batch, input_size, hidden_size, output_size = 2, 16, 32, 8

    k_x, k_p = jax.random.split(key)
    x = jax.random.normal(k_x, (batch, input_size), jnp.float32)
    w1, b1, w2, b2 = init_params(k_p, input_size, hidden_size, output_size)

    # --- Small f32 case: exact match against the PyTorch-equivalent reference.
    params_f32 = prepare_params(w1, b1, w2, b2)         # hoisted, done once
    out = dqn_forward(x, params_f32)
    jax.block_until_ready(out)
    ref = jnp.maximum(x @ w1 + b1, 0.0) @ w2 + b2
    assert out.shape == (batch, output_size)
    assert jnp.allclose(out, ref, atol=1e-5, rtol=1e-5)

    # --- Larger batched bf16 case: multi-step "parallel" grid with resident
    # weights and unpadded streamed tiles; weights prepared once and reused.
    params_bf16 = prepare_params(w1, b1, w2, b2, use_bf16=True)
    big_b = 1024
    xb = jax.random.normal(jax.random.PRNGKey(1), (big_b, input_size), jnp.float32)
    xb16 = xb.astype(jnp.bfloat16)                      # pre-cast once (hoisted)
    out_b = dqn_forward(xb16, params_bf16, block_b=256)
    jax.block_until_ready(out_b)
    w1b, w2b = w1.astype(jnp.bfloat16), w2.astype(jnp.bfloat16)
    h_ref = jnp.maximum(
        jnp.dot(xb16, w1b, preferred_element_type=jnp.float32) + b1, 0.0)
    ref_b = jnp.dot(h_ref.astype(jnp.bfloat16), w2b,
                    preferred_element_type=jnp.float32) + b2
    assert out_b.shape == (big_b, output_size)
    assert jnp.allclose(out_b, ref_b, atol=3e-2, rtol=3e-2)

    print("KERNEL_OK")
</pallas_src>

<mosaic_0001>
module attributes {stable_mosaic.version = 11 : i64} {
  func.func @dqn_kernel(%arg0: i32, %arg1: memref<8x16xf32, #tpu.memory_space<vmem>>, %arg2: memref<16x128xf32, #tpu.memory_space<vmem>>, %arg3: memref<1x128xf32, #tpu.memory_space<vmem>>, %arg4: memref<128x8xf32, #tpu.memory_space<vmem>>, %arg5: memref<1x8xf32, #tpu.memory_space<vmem>>, %arg6: memref<8x8xf32, #tpu.memory_space<vmem>>) attributes {dimension_semantics = [#tpu.dimension_semantics<parallel>], iteration_bounds = array<i64: 1>, scalar_prefetch = 0 : i64, scratch_operands = 0 : i64, tpu.core_type = #tpu.core_type<tc>, window_params = [{transform_indices = @transform_0, window_bounds = array<i64: 8, 16>}, {pipeline_mode = #tpu.pipeline_mode<synchronous>, transform_indices = @transform_1, window_bounds = array<i64: 16, 128>}, {pipeline_mode = #tpu.pipeline_mode<synchronous>, transform_indices = @transform_2, window_bounds = array<i64: 1, 128>}, {pipeline_mode = #tpu.pipeline_mode<synchronous>, transform_indices = @transform_3, window_bounds = array<i64: 128, 8>}, {pipeline_mode = #tpu.pipeline_mode<synchronous>, transform_indices = @transform_4, window_bounds = array<i64: 1, 8>}, {transform_indices = @transform_5, window_bounds = array<i64: 8, 8>}]} {
    %c0 = arith.constant 0 : index
    %c0_0 = arith.constant 0 : index
    %0 = vector.load %arg1[%c0, %c0_0] : memref<8x16xf32, #tpu.memory_space<vmem>>, vector<8x16xf32>
    %c0_1 = arith.constant 0 : index
    %c0_2 = arith.constant 0 : index
    %1 = vector.load %arg2[%c0_1, %c0_2] : memref<16x128xf32, #tpu.memory_space<vmem>>, vector<16x128xf32>
    %cst = arith.constant dense<0.000000e+00> : vector<8x128xf32>
    %2 = tpu.matmul %0, %1, %cst {dimension_numbers = #tpu.dot_dimension_numbers<[1], [0], [0], [1], [0, 0, 1, 1], [], []>} : vector<8x16xf32>, vector<16x128xf32>, vector<8x128xf32> -> vector<8x128xf32>
    %c0_3 = arith.constant 0 : index
    %c0_4 = arith.constant 0 : index
    %3 = vector.load %arg3[%c0_3, %c0_4] : memref<1x128xf32, #tpu.memory_space<vmem>>, vector<1x128xf32>
    %4 = vector.broadcast %3 : vector<1x128xf32> to vector<8x128xf32>
    %5 = arith.addf %2, %4 : vector<8x128xf32>
    %cst_5 = arith.constant 0.000000e+00 : f32
    %6 = vector.broadcast %cst_5 : f32 to vector<8x128xf32>
    %7 = arith.maximumf %5, %6 : vector<8x128xf32>
    %c0_6 = arith.constant 0 : index
    %c0_7 = arith.constant 0 : index
    %8 = vector.load %arg4[%c0_6, %c0_7] : memref<128x8xf32, #tpu.memory_space<vmem>>, vector<128x8xf32>
    %cst_8 = arith.constant dense<0.000000e+00> : vector<8x8xf32>
    %9 = tpu.matmul %7, %8, %cst_8 {dimension_numbers = #tpu.dot_dimension_numbers<[1], [0], [0], [1], [0, 0, 1, 1], [], []>} : vector<8x128xf32>, vector<128x8xf32>, vector<8x8xf32> -> vector<8x8xf32>
    %c0_9 = arith.constant 0 : index
    %c0_10 = arith.constant 0 : index
    %10 = vector.load %arg5[%c0_9, %c0_10] : memref<1x8xf32, #tpu.memory_space<vmem>>, vector<1x8xf32>
    %11 = vector.broadcast %10 : vector<1x8xf32> to vector<8x8xf32>
    %12 = arith.addf %9, %11 : vector<8x8xf32>
    %c0_11 = arith.constant 0 : index
    %c0_12 = arith.constant 0 : index
    %13 = vector.load %arg6[%c0_11, %c0_12] : memref<8x8xf32, #tpu.memory_space<vmem>>, vector<8x8xf32>
    tpu.vector_store %arg6[%c0_11, %c0_12], %12 {strides = array<i32>} : memref<8x8xf32, #tpu.memory_space<vmem>>, vector<8x8xf32>,
    return
  }
  func.func @transform_0(%arg0: i32) -> (i32, i32) {
    %c0_i32 = arith.constant 0 : i32
    %c0_i32_0 = arith.constant 0 : i32
    return %arg0, %c0_i32 : i32, i32
  }
  func.func @transform_1(%arg0: i32) -> (i32, i32) {
    %c0_i32 = arith.constant 0 : i32
    %c0_i32_0 = arith.constant 0 : i32
    %c0_i32_1 = arith.constant 0 : i32
    return %c0_i32, %c0_i32_0 : i32, i32
  }
  func.func @transform_2(%arg0: i32) -> (i32, i32) {
    %c0_i32 = arith.constant 0 : i32
    %c0_i32_0 = arith.constant 0 : i32
    %c0_i32_1 = arith.constant 0 : i32
    return %c0_i32, %c0_i32_0 : i32, i32
  }
  func.func @transform_3(%arg0: i32) -> (i32, i32) {
    %c0_i32 = arith.constant 0 : i32
    %c0_i32_0 = arith.constant 0 : i32
    %c0_i32_1 = arith.constant 0 : i32
    return %c0_i32, %c0_i32_0 : i32, i32
  }
  func.func @transform_4(%arg0: i32) -> (i32, i32) {
    %c0_i32 = arith.constant 0 : i32
    %c0_i32_0 = arith.constant 0 : i32
    %c0_i32_1 = arith.constant 0 : i32
    return %c0_i32, %c0_i32_0 : i32, i32
  }
  func.func @transform_5(%arg0: i32) -> (i32, i32) {
    %c0_i32 = arith.constant 0 : i32
    %c0_i32_0 = arith.constant 0 : i32
    return %arg0, %c0_i32 : i32, i32
  }
}

</mosaic_0001>

<llo_original>
// kernel: tpu_custom_call.1
$region0: #{tpu_custom_call.1}
  #allocation0 [shape = 'u32[]', space=smem, size = 0x4, offset = 0x4, fixed_abs, tag = 'smem constant byte address 0x4 - core index']
  #allocation1 [shape = 'u32[144,128]{1,0:T(1,128)}', space=vmem, size = 0x12000, scoped, tag = 'internal scratch']
  %s0 = inlined_call_operand.vmem [shape: f32[8,16], index: 0, kind: input, shape index: {}]
  %s1 = inlined_call_operand.vmem [shape: f32[16,128], index: 1, kind: input, shape index: {}]
  %s2 = inlined_call_operand.vmem [shape: f32[1,128], index: 2, kind: input, shape index: {}]
  %s3 = inlined_call_operand.vmem [shape: f32[128,8], index: 3, kind: input, shape index: {}]
  %s4 = inlined_call_operand.vmem [shape: f32[1,8], index: 4, kind: input, shape index: {}]
  %s5 = inlined_call_operand.hbm [shape: f32[8,8], index: 5, kind: output, shape index: {}]
  %s6 = sld [smem:[#allocation0]]
  $region30: #{tpu_custom_call.1} parent=0
    _
  %s8 = ssub.s32 1, %s6
  %s9 = scalar_select 0, %s8, %s6
  $region1: #{tpu_custom_call.1} parent=0
    #allocation2 [shape = 'u8[4096]{0}', space=vmem, size = 0x1000, scoped, tag = 'output window, operand 0, single buffered']
    #allocation3 [shape = 's32[1]{0}', space=sflag, size = 0x4, scoped, tag = 'scoped memory for tpu_custom_call.1']
    %10 = vsyncpa [#allocation3], 0
    // Predicated region
    $region2: #{tpu_custom_call.1} parent=1 // pred_check
      _
    $region3: #{tpu_custom_call.1} parent=1 // pred_check_branch
      %12 = sbr.rel (0) target = $region5
    $region4: #{tpu_custom_call.1} parent=1 // pred_region
      _
    $region5: #{tpu_custom_call.1} parent=1 // pred_fallthru
      _
    // Predicated region
    $region6: #{tpu_custom_call.1} parent=1 // pred_check
      _
    $region7: #{tpu_custom_call.1} parent=1 // pred_check_branch
      %14 = sbr.rel (0) target = $region9
    $region8: #{tpu_custom_call.1} parent=1 // pred_region
      _
    $region9: #{tpu_custom_call.1} parent=1 // pred_fallthru
      _
    // Predicated region
    $region10: #{tpu_custom_call.1} parent=1 // pred_check
      _
    $region11: #{tpu_custom_call.1} parent=1 // pred_check_branch
      %16 = sbr.rel (0) target = $region13
    $region12: #{tpu_custom_call.1} parent=1 // pred_region
      _
    $region13: #{tpu_custom_call.1} parent=1 // pred_fallthru
      _
    // Predicated region
    $region14: #{tpu_custom_call.1} parent=1 // pred_check
      _
    $region15: #{tpu_custom_call.1} parent=1 // pred_check_branch
      %18 = sbr.rel (0) target = $region17
    $region16: #{tpu_custom_call.1} parent=1 // pred_region
      _
    $region17: #{tpu_custom_call.1} parent=1 // pred_fallthru
      _
    // Predicated region
    $region18: #{tpu_custom_call.1} parent=1 // pred_check
      _
    $region19: #{tpu_custom_call.1} parent=1 // pred_check_branch
      %20 = sbr.rel (0) target = $region21
    $region20: #{tpu_custom_call.1} parent=1 // pred_region
      _
    $region21: #{tpu_custom_call.1} parent=1 // pred_fallthru
      _
    %v21 = vld [vmem:[%s0] sm:$0xff]
    %v22 = vld [vmem:[%s1] sm:$0xff]
    %v23 = vld [vmem:[%s1 + $0x8] sm:$0xff]
    %v24 = vld [vmem:[%s2] sm:$0x1]
    %v26 = vlaneseq
    %v27 = vshrl.u32 %v26, 7
    %v28 = vsub.s32 0, %v27
    %v29 = vrot.slane %v24, %v28
    %vm31 = vcmask 130048
    %v33 = vsel %vm31, %v21, 0
    %35 = vmatprep.subr.mxu0 0.0
    %36 = vmatpush1.msra.mxu0 %v22
    %37 = vmatprep.subr.mxu0 0.0
    %38 = vmatpush1.msra.mxu0 %v23
    %39 = vmatprep.subr.mxu0 0.0
    %40 = vmatpush1.msra.mxu0 0.0
    %41 = vmatprep.subr.mxu0 0.0
    %42 = vmatpush1.msra.mxu0 0.0
    %43 = vmatprep.subr.mxu0 0.0
    %44 = vmatpush1.msra.mxu0 0.0
    %45 = vmatprep.subr.mxu0 0.0
    %46 = vmatpush1.msra.mxu0 0.0
    %47 = vmatprep.subr.mxu0 0.0
    %48 = vmatpush1.msra.mxu0 0.0
    %49 = vmatprep.subr.mxu0 0.0
    %50 = vmatpush1.msra.mxu0 0.0
    %51 = vmatprep.subr.mxu0 0.0
    %52 = vmatpush1.msra.mxu0 0.0
    %53 = vmatprep.subr.mxu0 0.0
    %54 = vmatpush1.msra.mxu0 0.0
    %55 = vmatprep.subr.mxu0 0.0
    %56 = vmatpush1.msra.mxu0 0.0
    %57 = vmatprep.subr.mxu0 0.0
    %58 = vmatpush1.msra.mxu0 0.0
    %59 = vmatprep.subr.mxu0 0.0
    %60 = vmatpush1.msra.mxu0 0.0
    %61 = vmatprep.subr.mxu0 0.0
    %62 = vmatpush1.msra.mxu0 0.0
    %63 = vmatprep.subr.mxu0 0.0
    %64 = vmatpush1.msra.mxu0 0.0
    %65 = vmatprep.subr.mxu0 0.0
    %66 = vmatpush1.msra.mxu0 0.0
    %67 = vmatprep.subr.mxu0 0.0
    %68 = vmatpush1.msra.mxu0 0.0
    %69 = vmatprep.subr.mxu0 0.0
    %70 = vmatpush1.msra.mxu0 0.0
    %71 = vmatprep.subr.mxu0 0.0
    %72 = vmatpush1.msra.mxu0 0.0
    %73 = vmatprep.subr.mxu0 0.0
    %74 = vmatpush1.msra.mxu0 0.0
    %75 = vmatprep.subr.mxu0 0.0
    %76 = vmatpush1.msra.mxu0 0.0
    %77 = vmatprep.subr.mxu0 0.0
    %78 = vmatpush1.msra.mxu0 0.0
    %79 = vmatprep.subr.mxu0 0.0
    %80 = vmatpush1.msra.mxu0 0.0
    %81 = vmatprep.subr.mxu0 0.0
    %82 = vmatpush1.msra.mxu0 0.0
    %83 = vmatprep.subr.mxu0 0.0
    %84 = vmatpush1.msra.mxu0 0.0
    %85 = vmatprep.subr.mxu0 0.0
    %86 = vmatpush1.msra.mxu0 0.0
    %87 = vmatprep.subr.mxu0 0.0
    %88 = vmatpush1.msra.mxu0 0.0
    %89 = vmatprep.subr.mxu0 0.0
    %90 = vmatpush1.msra.mxu0 0.0
    %91 = vmatprep.subr.mxu0 0.0
    %92 = vmatpush1.msra.mxu0 0.0
    %93 = vmatprep.subr.mxu0 0.0
    %94 = vmatpush1.msra.mxu0 0.0
    %95 = vmatprep.subr.mxu0 0.0
    %96 = vmatpush1.msra.mxu0 0.0
    %97 = vmatprep.subr.mxu0 0.0
    %98 = vmatpush1.msra.mxu0 0.0
    %99 = vmatprep.mubr.f32.mxu0 0.0
    %100 = vmatmul.mubr.f32.gmra.mrb[0].mxu0 %v33
    %v101 = vpop.f32.mrb[0].mxu0
    %v102 = vadd.f32 %v29, %v101
    %v103 = vpop.f32.mrb[0].mxu0
    %104 = vdwg.mxu0
    %v105 = vmax.f32 %v102, 0.0
    %v106 = vld [vmem:[%s3] sm:$0xff]
    %v107 = vld [vmem:[%s3 + $0x8] sm:$0xff]
    %v108 = vld [vmem:[%s3 + $0x10] sm:$0xff]
    %v109 = vld [vmem:[%s3 + $0x18] sm:$0xff]
    %v110 = vld [vmem:[%s3 + $0x20] sm:$0xff]
    %v111 = vld [vmem:[%s3 + $0x28] sm:$0xff]
    %v112 = vld [vmem:[%s3 + $0x30] sm:$0xff]
    %v113 = vld [vmem:[%s3 + $0x38] sm:$0xff]
    %v114 = vld [vmem:[%s3 + $0x40] sm:$0xff]
    %v115 = vld [vmem:[%s3 + $0x48] sm:$0xff]
    %v116 = vld [vmem:[%s3 + $0x50] sm:$0xff]
    %v117 = vld [vmem:[%s3 + $0x58] sm:$0xff]
    %v118 = vld [vmem:[%s3 + $0x60] sm:$0xff]
    %v119 = vld [vmem:[%s3 + $0x68] sm:$0xff]
    %v120 = vld [vmem:[%s3 + $0x70] sm:$0xff]
    %v121 = vld [vmem:[%s3 + $0x78] sm:$0xff]
    %v122 = vld [vmem:[%s4] sm:$0x1]
    %v124 = vlaneseq
    %v125 = vshrl.u32 %v124, 7
    %v126 = vsub.s32 0, %v125
    %v127 = vrot.slane %v122, %v126
    %129 = vmatprep.subr.mxu0 0.0
    %130 = vmatpush1.msra.mxu0 %v106
    %131 = vmatprep.subr.mxu0 0.0
    %132 = vmatpush1.msra.mxu0 %v107
    %133 = vmatprep.subr.mxu0 0.0
    %134 = vmatpush1.msra.mxu0 %v108
    %135 = vmatprep.subr.mxu0 0.0
    %136 = vmatpush1.msra.mxu0 %v109
    %137 = vmatprep.subr.mxu0 0.0
    %138 = vmatpush1.msra.mxu0 %v110
    %139 = vmatprep.subr.mxu0 0.0
    %140 = vmatpush1.msra.mxu0 %v111
    %141 = vmatprep.subr.mxu0 0.0
    %142 = vmatpush1.msra.mxu0 %v112
    %143 = vmatprep.subr.mxu0 0.0
    %144 = vmatpush1.msra.mxu0 %v113
    %145 = vmatprep.subr.mxu0 0.0
    %146 = vmatpush1.msra.mxu0 %v114
    %147 = vmatprep.subr.mxu0 0.0
    %148 = vmatpush1.msra.mxu0 %v115
    %149 = vmatprep.subr.mxu0 0.0
    %150 = vmatpush1.msra.mxu0 %v116
    %151 = vmatprep.subr.mxu0 0.0
    %152 = vmatpush1.msra.mxu0 %v117
    %153 = vmatprep.subr.mxu0 0.0
    %154 = vmatpush1.msra.mxu0 %v118
    %155 = vmatprep.subr.mxu0 0.0
    %156 = vmatpush1.msra.mxu0 %v119
    %157 = vmatprep.subr.mxu0 0.0
    %158 = vmatpush1.msra.mxu0 %v120
    %159 = vmatprep.subr.mxu0 0.0
    %160 = vmatpush1.msra.mxu0 %v121
    %161 = vmatprep.subr.mxu0 0.0
    %162 = vmatpush1.msra.mxu0 0.0
    %163 = vmatprep.subr.mxu0 0.0
    %164 = vmatpush1.msra.mxu0 0.0
    %165 = vmatprep.subr.mxu0 0.0
    %166 = vmatpush1.msra.mxu0 0.0
    %167 = vmatprep.subr.mxu0 0.0
    %168 = vmatpush1.msra.mxu0 0.0
    %169 = vmatprep.subr.mxu0 0.0
    %170 = vmatpush1.msra.mxu0 0.0
    %171 = vmatprep.subr.mxu0 0.0
    %172 = vmatpush1.msra.mxu0 0.0
    %173 = vmatprep.subr.mxu0 0.0
    %174 = vmatpush1.msra.mxu0 0.0
    %175 = vmatprep.subr.mxu0 0.0
    %176 = vmatpush1.msra.mxu0 0.0
    %177 = vmatprep.subr.mxu0 0.0
    %178 = vmatpush1.msra.mxu0 0.0
    %179 = vmatprep.subr.mxu0 0.0
    %180 = vmatpush1.msra.mxu0 0.0
    %181 = vmatprep.subr.mxu0 0.0
    %182 = vmatpush1.msra.mxu0 0.0
    %183 = vmatprep.subr.mxu0 0.0
    %184 = vmatpush1.msra.mxu0 0.0
    %185 = vmatprep.subr.mxu0 0.0
    %186 = vmatpush1.msra.mxu0 0.0
    %187 = vmatprep.subr.mxu0 0.0
    %188 = vmatpush1.msra.mxu0 0.0
    %189 = vmatprep.subr.mxu0 0.0
    %190 = vmatpush1.msra.mxu0 0.0
    %191 = vmatprep.subr.mxu0 0.0
    %192 = vmatpush1.msra.mxu0 0.0
    %193 = vmatprep.mubr.f32.mxu0 0.0
    %194 = vmatmul.mubr.f32.gmra.mrb[0].mxu0 %v105
    %v195 = vpop.f32.mrb[0].mxu0
    %v196 = vadd.f32 %v127, %v195
    %v197 = vpop.f32.mrb[0].mxu0
    %198 = vdwg.mxu0
    %vm199 = vcmask 64512
    %200 = vst.msk [vmem:[#allocation2] sm:$0xff] %vm199, %v196
    // Predicated region
    $region22: #{tpu_custom_call.1} parent=1 // pred_check
      _
    $region23: #{tpu_custom_call.1} parent=1 // pred_check_branch
      %202 = sbr.rel (0) target = $region25
    $region24: #{tpu_custom_call.1} parent=1 // pred_region
      %s204 = ssub.s32 128, 128
      %205 = vsyncadd [#allocation3], %s204
      %s207 = sshll.u32 [#allocation2], 4
      %s208 = int_to_ptr.vmem [resolvable:$true] %s207
      %210 = dma.vmem_to_hbm [thread:$0]  %s208, 128, %s5, [#allocation3]
    $region25: #{tpu_custom_call.1} parent=1 // pred_fallthru
      _
    // Predicated region
    $region26: #{tpu_custom_call.1} parent=1 // pred_check
      _
    $region27: #{tpu_custom_call.1} parent=1 // pred_check_branch
      %212 = sbr.rel (0) target = $region29
    $region28: #{tpu_custom_call.1} parent=1 // pred_region
      %213 = dma.done [#allocation3], 128
    $region29: #{tpu_custom_call.1} parent=1 // pred_fallthru
      _
    %214 = vsyncpa [#allocation3], 1

</llo_original>
